<compile_context>
chip_gen: v7x
topology: tpu7x:2x2x1
jax: 0.10.0
libtpu: 0.0.40
codegen_flags: <defaults>
</compile_context>

<pallas_src>
import math

import jax
import jax.numpy as jnp
from jax import lax
from jax.experimental import pallas as pl
from jax.experimental.pallas import tpu as pltpu

_LANES = 128   # lane width of a vreg
_SUB = 8       # sublane count of a vreg
_SLAB_LEN = 32 # 8 + 4 + 8 + 2 + 4 + 2 = 28 packed params, padded to 32


# ---------------------------------------------------------------------------
# Parameter packing
# ---------------------------------------------------------------------------
def pack_params(params):
    """Pack all weights/biases into a single f32[32] slab (weights row-major (out, in)).

    Layout:
      [ 0: 8)  W1[n,k] at 2*n+k     [ 8:12) b1[n]
      [12:20)  W2[n,k] at 12+4*n+k  [20:22) b2[n]
      [22:26)  W3[n,k] at 22+2*n+k  [26:28) b3[n]
    """
    w1, b1 = params["w1"], params["b1"]   # (2, 4), (1, 4)   stored (in, out)
    w2, b2 = params["w2"], params["b2"]   # (4, 2), (1, 2)
    w3, b3 = params["w3"], params["b3"]   # (2, 2), (1, 2)
    slab = jnp.concatenate([
        w1.T.reshape(-1), b1.reshape(-1),
        w2.T.reshape(-1), b2.reshape(-1),
        w3.T.reshape(-1), b3.reshape(-1),
    ]).astype(jnp.float32)
    return jnp.pad(slab, (0, _SLAB_LEN - slab.shape[0]))


# ---------------------------------------------------------------------------
# Kernel
# ---------------------------------------------------------------------------
def _make_kernel(chunk_rows, n_chunks, activation):
    """chunk_rows: rows processed per inner step (multiple of 8, bounds vreg live set).
    n_chunks: static trip count (block_rows // chunk_rows).
    activation: 'relu' (default of the PyTorch module) or 'elu'."""

    if activation == "relu":
        def act(v):
            return jnp.maximum(v, 0.0)
    else:  # ELU, alpha = 1.0 (PyTorch nn.ELU default)
        def act(v):
            return jnp.where(v > 0.0, v, jnp.exp(jnp.minimum(v, 0.0)) - 1.0)

    def kernel(w_ref, x_ref, o_ref):
        # w_ref: f32[32] in SMEM, resident across all grid steps.
        # x_ref / o_ref: (2, block_rows, 128) VMEM blocks (dense feature planes).
        # Hoist all scalar weights into sregs once (outside the inner loop).
        w1 = [[w_ref[2 * n + k] for k in range(2)] for n in range(4)]
        b1 = [w_ref[8 + n] for n in range(4)]
        w2 = [[w_ref[12 + 4 * n + k] for k in range(4)] for n in range(2)]
        b2 = [w_ref[20 + n] for n in range(2)]
        w3 = [[w_ref[22 + 2 * n + k] for k in range(2)] for n in range(2)]
        b3 = [w_ref[26 + n] for n in range(2)]

        def body(c, carry):
            r = pl.multiple_of(c * chunk_rows, chunk_rows)
            rs = pl.ds(r, chunk_rows)
            x0 = x_ref[0, rs, :]          # (chunk_rows, 128) dense plane
            x1 = x_ref[1, rs, :]

            # Layer 1: Linear(2 -> 4) + act  (scalar-broadcast FMAs on the VPU)
            h1 = [act(w1[n][0] * x0 + w1[n][1] * x1 + b1[n]) for n in range(4)]

            # Layer 2: Linear(4 -> 2) + act
            h2 = []
            for n in range(2):
                v = (w2[n][0] * h1[0] + w2[n][1] * h1[1]
                     + w2[n][2] * h1[2] + w2[n][3] * h1[3] + b2[n])
                h2.append(act(v))

            # Layer 3: Linear(2 -> 2), no activation -- full-width unmasked stores
            o_ref[0, rs, :] = w3[0][0] * h2[0] + w3[0][1] * h2[1] + b3[0]
            o_ref[1, rs, :] = w3[1][0] * h2[0] + w3[1][1] * h2[1] + b3[1]
            return carry

        lax.fori_loop(0, n_chunks, body, 0)

    return kernel


# ---------------------------------------------------------------------------
# Wrappers
# ---------------------------------------------------------------------------
def mlp_forward_planes(x_planes, slab, *, activation="relu",
                       target_block_elems=1 << 16):
    """Core entry point on the feature-major plane layout (no relayout copies).

    x_planes: (2, rows, 128) float32 with rows % 8 == 0 (batch = rows*128).
    slab:     f32[32] packed parameters (see pack_params).
    Returns (2, rows, 128) float32.
    """
    two, rows, lanes = x_planes.shape
    assert two == 2 and lanes == _LANES and rows % _SUB == 0

    # Big blocks amortize per-step overhead; keep >=2 grid steps when there is
    # enough work so v7x's two TensorCores both get a share ("parallel" axis).
    target_rows = max(_SUB, (target_block_elems // _LANES) // _SUB * _SUB)
    if rows >= 2 * _SUB:
        target_rows = min(target_rows, pl.cdiv(rows, 2 * _SUB) * _SUB)
    row_tile = min(target_rows, rows)

    chunk = math.gcd(32, row_tile)        # 8/16/32 rows per inner step
    n_chunks = row_tile // chunk
    n_steps = pl.cdiv(rows, row_tile)     # ragged tail block is masked by Pallas

    bp = rows * _LANES
    cost = pl.CostEstimate(
        flops=46 * bp,
        transcendentals=0 if activation == "relu" else 6 * bp,
        bytes_accessed=16 * bp + 4 * _SLAB_LEN,
    )

    return pl.pallas_call(
        _make_kernel(chunk, n_chunks, activation),
        out_shape=jax.ShapeDtypeStruct((2, rows, _LANES), jnp.float32),
        grid=(n_steps,),
        in_specs=[
            pl.BlockSpec(memory_space=pltpu.MemorySpace.SMEM),      # resident weights
            pl.BlockSpec((2, row_tile, _LANES), lambda i: (0, i, 0)),
        ],
        out_specs=pl.BlockSpec((2, row_tile, _LANES), lambda i: (0, i, 0)),
        compiler_params=pltpu.CompilerParams(
            dimension_semantics=("parallel",),    # shard batch across TCs on v7x
        ),
        cost_estimate=cost,
    )(slab, x_planes)


def mlp_forward(x, params, *, activation="relu", target_block_elems=1 << 16):
    """x: (B, 2) float32 (same layout as the PyTorch module). Returns (B, 2).

    Does a single fused pad+transpose+reshape into the (2, rows, 128) plane
    layout at the boundary (and the inverse on the way out).  Callers that can
    keep data feature-major should call mlp_forward_planes directly.
    """
    B = x.shape[0]
    slab = pack_params(params)

    bp = pl.cdiv(B, _SUB * _LANES) * (_SUB * _LANES)   # pad batch to whole (8,128) tiles
    rows = bp // _LANES

    xp = jnp.pad(x.astype(jnp.float32), ((0, bp - B), (0, 0))).T.reshape(2, rows, _LANES)
    op = mlp_forward_planes(xp, slab, activation=activation,
                            target_block_elems=target_block_elems)
    return op.reshape(2, bp).T[:B]


# ---------------------------------------------------------------------------
# Reference / init / self-test
# ---------------------------------------------------------------------------
def init_params(key):
    """PyTorch nn.Linear default init: U(-1/sqrt(fan_in), 1/sqrt(fan_in))."""
    def linear(key, fan_in, fan_out):
        kw, kb = jax.random.split(key)
        bound = 1.0 / jnp.sqrt(float(fan_in))
        w = jax.random.uniform(kw, (fan_in, fan_out), jnp.float32, -bound, bound)
        b = jax.random.uniform(kb, (1, fan_out), jnp.float32, -bound, bound)
        return w, b

    k1, k2, k3 = jax.random.split(key, 3)
    w1, b1 = linear(k1, 2, 4)
    w2, b2 = linear(k2, 4, 2)
    w3, b3 = linear(k3, 2, 2)
    return {"w1": w1, "b1": b1, "w2": w2, "b2": b2, "w3": w3, "b3": b3}


def mlp_reference(x, p, activation="relu"):
    act = (lambda v: jnp.maximum(v, 0.0)) if activation == "relu" else jax.nn.elu
    h1 = act(x @ p["w1"] + p["b1"])
    h2 = act(h1 @ p["w2"] + p["b2"])
    return h2 @ p["w3"] + p["b3"]


if __name__ == "__main__":
    key = jax.random.PRNGKey(0)
    kx, kp = jax.random.split(key)
    params = init_params(kp)

    # (1) Small smoke test: B=8 -> one (8,128) plane per feature, single grid step.
    x8 = jax.random.normal(kx, (8, 2), dtype=jnp.float32)
    o8 = jax.block_until_ready(mlp_forward(x8, params))
    assert o8.shape == (8, 2)
    assert jnp.allclose(o8, mlp_reference(x8, params), atol=1e-5, rtol=1e-5), "mismatch (B=8)"

    # (2) Batch not a multiple of 1024: exercises the pad/slice path.
    x300 = jax.random.normal(jax.random.fold_in(kx, 1), (300, 2), dtype=jnp.float32)
    o300 = jax.block_until_ready(mlp_forward(x300, params))
    assert jnp.allclose(o300, mlp_reference(x300, params), atol=1e-5, rtol=1e-5), "mismatch (B=300)"

    # (3) Multi-step grid with a ragged tail block + inner chunk loop.
    x5k = jax.random.normal(jax.random.fold_in(kx, 2), (5000, 2), dtype=jnp.float32)
    o5k = jax.block_until_ready(mlp_forward(x5k, params))
    assert jnp.allclose(o5k, mlp_reference(x5k, params), atol=1e-5, rtol=1e-5), "mismatch (B=5000)"

    # (4) ELU branch of the module (activation != 'relu').
    oe = jax.block_until_ready(mlp_forward(x300, params, activation="elu"))
    assert jnp.allclose(oe, mlp_reference(x300, params, "elu"), atol=1e-5, rtol=1e-5), "mismatch (ELU)"

    print("KERNEL_OK")
</pallas_src>

<mosaic_0001>
module attributes {stable_mosaic.version = 11 : i64} {
  func.func @kernel(%arg0: i32, %arg1: memref<32xf32, #tpu.memory_space<smem>>, %arg2: memref<2x8x128xf32, #tpu.memory_space<vmem>>, %arg3: memref<2x8x128xf32, #tpu.memory_space<vmem>>) attributes {dimension_semantics = [#tpu.dimension_semantics<parallel>], iteration_bounds = array<i64: 1>, scalar_prefetch = 0 : i64, scratch_operands = 0 : i64, tpu.core_type = #tpu.core_type<tc>, window_params = [{transform_indices = @transform_0, window_bounds = array<i64: 32>}, {transform_indices = @transform_1, window_bounds = array<i64: 2, 8, 128>}, {transform_indices = @transform_2, window_bounds = array<i64: 2, 8, 128>}]} {
    %c0 = arith.constant 0 : index
    %0 = memref.load %arg1[%c0] : memref<32xf32, #tpu.memory_space<smem>>
    %c1 = arith.constant 1 : index
    %1 = memref.load %arg1[%c1] : memref<32xf32, #tpu.memory_space<smem>>
    %c2 = arith.constant 2 : index
    %2 = memref.load %arg1[%c2] : memref<32xf32, #tpu.memory_space<smem>>
    %c3 = arith.constant 3 : index
    %3 = memref.load %arg1[%c3] : memref<32xf32, #tpu.memory_space<smem>>
    %c4 = arith.constant 4 : index
    %4 = memref.load %arg1[%c4] : memref<32xf32, #tpu.memory_space<smem>>
    %c5 = arith.constant 5 : index
    %5 = memref.load %arg1[%c5] : memref<32xf32, #tpu.memory_space<smem>>
    %c6 = arith.constant 6 : index
    %6 = memref.load %arg1[%c6] : memref<32xf32, #tpu.memory_space<smem>>
    %c7 = arith.constant 7 : index
    %7 = memref.load %arg1[%c7] : memref<32xf32, #tpu.memory_space<smem>>
    %c8 = arith.constant 8 : index
    %8 = memref.load %arg1[%c8] : memref<32xf32, #tpu.memory_space<smem>>
    %c9 = arith.constant 9 : index
    %9 = memref.load %arg1[%c9] : memref<32xf32, #tpu.memory_space<smem>>
    %c10 = arith.constant 10 : index
    %10 = memref.load %arg1[%c10] : memref<32xf32, #tpu.memory_space<smem>>
    %c11 = arith.constant 11 : index
    %11 = memref.load %arg1[%c11] : memref<32xf32, #tpu.memory_space<smem>>
    %c12 = arith.constant 12 : index
    %12 = memref.load %arg1[%c12] : memref<32xf32, #tpu.memory_space<smem>>
    %c13 = arith.constant 13 : index
    %13 = memref.load %arg1[%c13] : memref<32xf32, #tpu.memory_space<smem>>
    %c14 = arith.constant 14 : index
    %14 = memref.load %arg1[%c14] : memref<32xf32, #tpu.memory_space<smem>>
    %c15 = arith.constant 15 : index
    %15 = memref.load %arg1[%c15] : memref<32xf32, #tpu.memory_space<smem>>
    %c16 = arith.constant 16 : index
    %16 = memref.load %arg1[%c16] : memref<32xf32, #tpu.memory_space<smem>>
    %c17 = arith.constant 17 : index
    %17 = memref.load %arg1[%c17] : memref<32xf32, #tpu.memory_space<smem>>
    %c18 = arith.constant 18 : index
    %18 = memref.load %arg1[%c18] : memref<32xf32, #tpu.memory_space<smem>>
    %c19 = arith.constant 19 : index
    %19 = memref.load %arg1[%c19] : memref<32xf32, #tpu.memory_space<smem>>
    %c20 = arith.constant 20 : index
    %20 = memref.load %arg1[%c20] : memref<32xf32, #tpu.memory_space<smem>>
    %c21 = arith.constant 21 : index
    %21 = memref.load %arg1[%c21] : memref<32xf32, #tpu.memory_space<smem>>
    %c22 = arith.constant 22 : index
    %22 = memref.load %arg1[%c22] : memref<32xf32, #tpu.memory_space<smem>>
    %c23 = arith.constant 23 : index
    %23 = memref.load %arg1[%c23] : memref<32xf32, #tpu.memory_space<smem>>
    %c24 = arith.constant 24 : index
    %24 = memref.load %arg1[%c24] : memref<32xf32, #tpu.memory_space<smem>>
    %c25 = arith.constant 25 : index
    %25 = memref.load %arg1[%c25] : memref<32xf32, #tpu.memory_space<smem>>
    %c26 = arith.constant 26 : index
    %26 = memref.load %arg1[%c26] : memref<32xf32, #tpu.memory_space<smem>>
    %c27 = arith.constant 27 : index
    %27 = memref.load %arg1[%c27] : memref<32xf32, #tpu.memory_space<smem>>
    %c0_i32 = arith.constant 0 : i32
    %c8_i32 = arith.constant 8 : i32
    %28 = arith.muli %c0_i32, %c8_i32 : i32
    %29 = tpu.assume_multiple %28, 8 : i32
    %c0_0 = arith.constant 0 : index
    %30 = arith.index_cast %29 : i32 to index
    %c0_1 = arith.constant 0 : index
    %31 = vector.load %arg2[%c0_0, %30, %c0_1] : memref<2x8x128xf32, #tpu.memory_space<vmem>>, vector<1x8x128xf32>
    %32 = vector.shape_cast %31 : vector<1x8x128xf32> to vector<8x128xf32>
    %c1_2 = arith.constant 1 : index
    %33 = arith.index_cast %29 : i32 to index
    %c0_3 = arith.constant 0 : index
    %34 = vector.load %arg2[%c1_2, %33, %c0_3] : memref<2x8x128xf32, #tpu.memory_space<vmem>>, vector<1x8x128xf32>
    %35 = vector.shape_cast %34 : vector<1x8x128xf32> to vector<8x128xf32>
    %36 = vector.broadcast %0 : f32 to vector<8x128xf32>
    %37 = arith.mulf %36, %32 : vector<8x128xf32>
    %38 = vector.broadcast %1 : f32 to vector<8x128xf32>
    %39 = arith.mulf %38, %35 : vector<8x128xf32>
    %40 = arith.addf %37, %39 : vector<8x128xf32>
    %41 = vector.broadcast %8 : f32 to vector<8x128xf32>
    %42 = arith.addf %40, %41 : vector<8x128xf32>
    %cst = arith.constant 0.000000e+00 : f32
    %43 = vector.broadcast %cst : f32 to vector<8x128xf32>
    %44 = arith.maximumf %42, %43 : vector<8x128xf32>
    %45 = vector.broadcast %2 : f32 to vector<8x128xf32>
    %46 = arith.mulf %45, %32 : vector<8x128xf32>
    %47 = vector.broadcast %3 : f32 to vector<8x128xf32>
    %48 = arith.mulf %47, %35 : vector<8x128xf32>
    %49 = arith.addf %46, %48 : vector<8x128xf32>
    %50 = vector.broadcast %9 : f32 to vector<8x128xf32>
    %51 = arith.addf %49, %50 : vector<8x128xf32>
    %cst_4 = arith.constant 0.000000e+00 : f32
    %52 = vector.broadcast %cst_4 : f32 to vector<8x128xf32>
    %53 = arith.maximumf %51, %52 : vector<8x128xf32>
    %54 = vector.broadcast %4 : f32 to vector<8x128xf32>
    %55 = arith.mulf %54, %32 : vector<8x128xf32>
    %56 = vector.broadcast %5 : f32 to vector<8x128xf32>
    %57 = arith.mulf %56, %35 : vector<8x128xf32>
    %58 = arith.addf %55, %57 : vector<8x128xf32>
    %59 = vector.broadcast %10 : f32 to vector<8x128xf32>
    %60 = arith.addf %58, %59 : vector<8x128xf32>
    %cst_5 = arith.constant 0.000000e+00 : f32
    %61 = vector.broadcast %cst_5 : f32 to vector<8x128xf32>
    %62 = arith.maximumf %60, %61 : vector<8x128xf32>
    %63 = vector.broadcast %6 : f32 to vector<8x128xf32>
    %64 = arith.mulf %63, %32 : vector<8x128xf32>
    %65 = vector.broadcast %7 : f32 to vector<8x128xf32>
    %66 = arith.mulf %65, %35 : vector<8x128xf32>
    %67 = arith.addf %64, %66 : vector<8x128xf32>
    %68 = vector.broadcast %11 : f32 to vector<8x128xf32>
    %69 = arith.addf %67, %68 : vector<8x128xf32>
    %cst_6 = arith.constant 0.000000e+00 : f32
    %70 = vector.broadcast %cst_6 : f32 to vector<8x128xf32>
    %71 = arith.maximumf %69, %70 : vector<8x128xf32>
    %72 = vector.broadcast %12 : f32 to vector<8x128xf32>
    %73 = arith.mulf %72, %44 : vector<8x128xf32>
    %74 = vector.broadcast %13 : f32 to vector<8x128xf32>
    %75 = arith.mulf %74, %53 : vector<8x128xf32>
    %76 = arith.addf %73, %75 : vector<8x128xf32>
    %77 = vector.broadcast %14 : f32 to vector<8x128xf32>
    %78 = arith.mulf %77, %62 : vector<8x128xf32>
    %79 = arith.addf %76, %78 : vector<8x128xf32>
    %80 = vector.broadcast %15 : f32 to vector<8x128xf32>
    %81 = arith.mulf %80, %71 : vector<8x128xf32>
    %82 = arith.addf %79, %81 : vector<8x128xf32>
    %83 = vector.broadcast %20 : f32 to vector<8x128xf32>
    %84 = arith.addf %82, %83 : vector<8x128xf32>
    %cst_7 = arith.constant 0.000000e+00 : f32
    %85 = vector.broadcast %cst_7 : f32 to vector<8x128xf32>
    %86 = arith.maximumf %84, %85 : vector<8x128xf32>
    %87 = vector.broadcast %16 : f32 to vector<8x128xf32>
    %88 = arith.mulf %87, %44 : vector<8x128xf32>
    %89 = vector.broadcast %17 : f32 to vector<8x128xf32>
    %90 = arith.mulf %89, %53 : vector<8x128xf32>
    %91 = arith.addf %88, %90 : vector<8x128xf32>
    %92 = vector.broadcast %18 : f32 to vector<8x128xf32>
    %93 = arith.mulf %92, %62 : vector<8x128xf32>
    %94 = arith.addf %91, %93 : vector<8x128xf32>
    %95 = vector.broadcast %19 : f32 to vector<8x128xf32>
    %96 = arith.mulf %95, %71 : vector<8x128xf32>
    %97 = arith.addf %94, %96 : vector<8x128xf32>
    %98 = vector.broadcast %21 : f32 to vector<8x128xf32>
    %99 = arith.addf %97, %98 : vector<8x128xf32>
    %cst_8 = arith.constant 0.000000e+00 : f32
    %100 = vector.broadcast %cst_8 : f32 to vector<8x128xf32>
    %101 = arith.maximumf %99, %100 : vector<8x128xf32>
    %102 = vector.broadcast %22 : f32 to vector<8x128xf32>
    %103 = arith.mulf %102, %86 : vector<8x128xf32>
    %104 = vector.broadcast %23 : f32 to vector<8x128xf32>
    %105 = arith.mulf %104, %101 : vector<8x128xf32>
    %106 = arith.addf %103, %105 : vector<8x128xf32>
    %107 = vector.broadcast %26 : f32 to vector<8x128xf32>
    %108 = arith.addf %106, %107 : vector<8x128xf32>
    %c0_9 = arith.constant 0 : index
    %109 = arith.index_cast %29 : i32 to index
    %c0_10 = arith.constant 0 : index
    %110 = vector.load %arg3[%c0_9, %109, %c0_10] : memref<2x8x128xf32, #tpu.memory_space<vmem>>, vector<1x8x128xf32>
    %111 = vector.shape_cast %110 : vector<1x8x128xf32> to vector<8x128xf32>
    %112 = vector.shape_cast %108 : vector<8x128xf32> to vector<1x8x128xf32>
    tpu.vector_store %arg3[%c0_9, %109, %c0_10], %112 {strides = array<i32>} : memref<2x8x128xf32, #tpu.memory_space<vmem>>, vector<1x8x128xf32>,
    %113 = vector.broadcast %24 : f32 to vector<8x128xf32>
    %114 = arith.mulf %113, %86 : vector<8x128xf32>
    %115 = vector.broadcast %25 : f32 to vector<8x128xf32>
    %116 = arith.mulf %115, %101 : vector<8x128xf32>
    %117 = arith.addf %114, %116 : vector<8x128xf32>
    %118 = vector.broadcast %27 : f32 to vector<8x128xf32>
    %119 = arith.addf %117, %118 : vector<8x128xf32>
    %c1_11 = arith.constant 1 : index
    %120 = arith.index_cast %29 : i32 to index
    %c0_12 = arith.constant 0 : index
    %121 = vector.load %arg3[%c1_11, %120, %c0_12] : memref<2x8x128xf32, #tpu.memory_space<vmem>>, vector<1x8x128xf32>
    %122 = vector.shape_cast %121 : vector<1x8x128xf32> to vector<8x128xf32>
    %123 = vector.shape_cast %119 : vector<8x128xf32> to vector<1x8x128xf32>
    tpu.vector_store %arg3[%c1_11, %120, %c0_12], %123 {strides = array<i32>} : memref<2x8x128xf32, #tpu.memory_space<vmem>>, vector<1x8x128xf32>,
    %c1_i32 = arith.constant 1 : i32
    return
  }
  func.func @transform_0(%arg0: i32) -> i32 {
    %c0_i32 = arith.constant 0 : i32
    %c0_i32_0 = arith.constant 0 : i32
    return %c0_i32 : i32
  }
  func.func @transform_1(%arg0: i32) -> (i32, i32, i32) {
    %c0_i32 = arith.constant 0 : i32
    %c0_i32_0 = arith.constant 0 : i32
    %c0_i32_1 = arith.constant 0 : i32
    return %c0_i32, %arg0, %c0_i32_0 : i32, i32, i32
  }
  func.func @transform_2(%arg0: i32) -> (i32, i32, i32) {
    %c0_i32 = arith.constant 0 : i32
    %c0_i32_0 = arith.constant 0 : i32
    %c0_i32_1 = arith.constant 0 : i32
    return %c0_i32, %arg0, %c0_i32_0 : i32, i32, i32
  }
}

</mosaic_0001>

<llo_original>
// kernel: tpu_custom_call.1
$region0: #{tpu_custom_call.1}
  #allocation0 [shape = 'u32[]', space=smem, size = 0x4, offset = 0x4, fixed_abs, tag = 'smem constant byte address 0x4 - core index']
  #allocation1 [shape = 'u32[144,128]{1,0:T(1,128)}', space=vmem, size = 0x12000, scoped, tag = 'internal scratch']
  %s0 = inlined_call_operand.hbm [shape: f32[32], index: 0, kind: input, shape index: {}]
  %s1 = inlined_call_operand.hbm [shape: f32[2,8,128], index: 1, kind: input, shape index: {}]
  %s2 = inlined_call_operand.hbm [shape: f32[2,8,128], index: 2, kind: output, shape index: {}]
  %s3 = sld [smem:[#allocation0]]
  $region26: #{tpu_custom_call.1} parent=0
    _
  %s5 = ssub.s32 1, %s3
  %s6 = scalar_select 0, %s5, %s3
  $region1: #{tpu_custom_call.1} parent=0
    #allocation2 [shape = 'u8[512]{0}', space=smem, size = 0x200, scoped, tag = 'input window, operand 0, single buffered']
    #allocation3 [shape = 's32[1]{0}', space=sflag, size = 0x4, scoped, tag = 'scoped memory for tpu_custom_call.1']
    #allocation4 [shape = 's32[1]{0}', space=sflag, size = 0x4, scoped, tag = 'scoped memory for tpu_custom_call.1']
    #allocation5 [shape = 's32[1]{0}', space=sflag, size = 0x4, scoped, tag = 'scoped memory for tpu_custom_call.1']
    #allocation6 [shape = 'u8[8192]{0}', space=vmem, size = 0x2000, scoped, tag = 'input window, operand 1, single buffered']
    #allocation7 [shape = 'u8[8192]{0}', space=vmem, size = 0x2000, scoped, tag = 'output window, operand 0, single buffered']
    %7 = vsyncpa [#allocation5], 0
    %8 = vsyncpa [#allocation3], 0
    %9 = vsyncpa [#allocation4], 0
    // Predicated region
    $region2: #{tpu_custom_call.1} parent=1 // pred_check
      _
    $region3: #{tpu_custom_call.1} parent=1 // pred_check_branch
      %11 = sbr.rel (0) target = $region5
    $region4: #{tpu_custom_call.1} parent=1 // pred_region
      %s13 = ssub.s32 16, 16
      %14 = vsyncadd [#allocation5], %s13
      %17 = dma.hbm_to_smem %s0, 16, [#allocation2], [#allocation5]
    $region5: #{tpu_custom_call.1} parent=1 // pred_fallthru
      _
    // Predicated region
    $region6: #{tpu_custom_call.1} parent=1 // pred_check
      _
    $region7: #{tpu_custom_call.1} parent=1 // pred_check_branch
      %19 = sbr.rel (0) target = $region9
    $region8: #{tpu_custom_call.1} parent=1 // pred_region
      %s21 = ssub.s32 256, 256
      %22 = vsyncadd [#allocation3], %s21
      %s23 = sshll.u32 [#allocation6], 4
      %s24 = int_to_ptr.vmem [resolvable:$true] %s23
      %29 = dma.hbm_to_vmem [thread:$0]  %s1, 256, %s24, [#allocation3], 128, 128, 8
    $region9: #{tpu_custom_call.1} parent=1 // pred_fallthru
      _
    // Predicated region
    $region10: #{tpu_custom_call.1} parent=1 // pred_check
      _
    $region11: #{tpu_custom_call.1} parent=1 // pred_check_branch
      %31 = sbr.rel (0) target = $region13
    $region12: #{tpu_custom_call.1} parent=1 // pred_region
      %32 = dma.done [#allocation5], 16
    $region13: #{tpu_custom_call.1} parent=1 // pred_fallthru
      _
    // Predicated region
    $region14: #{tpu_custom_call.1} parent=1 // pred_check
      _
    $region15: #{tpu_custom_call.1} parent=1 // pred_check_branch
      %34 = sbr.rel (0) target = $region17
    $region16: #{tpu_custom_call.1} parent=1 // pred_region
      %35 = dma.done [#allocation3], 256
    $region17: #{tpu_custom_call.1} parent=1 // pred_fallthru
      _
    %36 = sfence
    %s37 = sld [smem:[#allocation2]]
    %s38 = sld [smem:[#allocation2 + $0x1]]
    %s39 = sld [smem:[#allocation2 + $0x2]]
    %s40 = sld [smem:[#allocation2 + $0x3]]
    %s41 = sld [smem:[#allocation2 + $0x4]]
    %s42 = sld [smem:[#allocation2 + $0x5]]
    %s43 = sld [smem:[#allocation2 + $0x6]]
    %s44 = sld [smem:[#allocation2 + $0x7]]
    %s45 = sld [smem:[#allocation2 + $0x8]]
    %s46 = sld [smem:[#allocation2 + $0x9]]
    %s47 = sld [smem:[#allocation2 + $0xa]]
    %s48 = sld [smem:[#allocation2 + $0xb]]
    %s49 = sld [smem:[#allocation2 + $0xc]]
    %s50 = sld [smem:[#allocation2 + $0xd]]
    %s51 = sld [smem:[#allocation2 + $0xe]]
    %s52 = sld [smem:[#allocation2 + $0xf]]
    %s53 = sld [smem:[#allocation2 + $0x10]]
    %s54 = sld [smem:[#allocation2 + $0x11]]
    %s55 = sld [smem:[#allocation2 + $0x12]]
    %s56 = sld [smem:[#allocation2 + $0x13]]
    %s57 = sld [smem:[#allocation2 + $0x14]]
    %s58 = sld [smem:[#allocation2 + $0x15]]
    %s59 = sld [smem:[#allocation2 + $0x16]]
    %s60 = sld [smem:[#allocation2 + $0x17]]
    %s61 = sld [smem:[#allocation2 + $0x18]]
    %s62 = sld [smem:[#allocation2 + $0x19]]
    %s63 = sld [smem:[#allocation2 + $0x1a]]
    %s64 = sld [smem:[#allocation2 + $0x1b]]
    %v65 = vld [vmem:[#allocation6] sm:$0xff]
    %s66 = sadd.s32 0, 8
    %s67 = scalar_lea.vmem [#allocation6], %s66
    %v68 = vld [vmem:[%s67] sm:$0xff]
    %v69 = vstv %s37
    %v70 = vmul.f32 %v69, %v65
    %v71 = vstv %s38
    %v72 = vmul.f32 %v71, %v68
    %v73 = vadd.f32 %v70, %v72
    %v74 = vstv %s45
    %v75 = vadd.f32 %v73, %v74
    %v76 = vmax.f32 %v75, 0.0
    %v77 = vstv %s39
    %v78 = vmul.f32 %v77, %v65
    %v79 = vstv %s40
    %v80 = vmul.f32 %v79, %v68
    %v81 = vadd.f32 %v78, %v80
    %v82 = vstv %s46
    %v83 = vadd.f32 %v81, %v82
    %v84 = vmax.f32 %v83, 0.0
    %v85 = vstv %s41
    %v86 = vmul.f32 %v85, %v65
    %v87 = vstv %s42
    %v88 = vmul.f32 %v87, %v68
    %v89 = vadd.f32 %v86, %v88
    %v90 = vstv %s47
    %v91 = vadd.f32 %v89, %v90
    %v92 = vmax.f32 %v91, 0.0
    %v93 = vstv %s43
    %v94 = vmul.f32 %v93, %v65
    %v95 = vstv %s44
    %v96 = vmul.f32 %v95, %v68
    %v97 = vadd.f32 %v94, %v96
    %v98 = vstv %s48
    %v99 = vadd.f32 %v97, %v98
    %v100 = vmax.f32 %v99, 0.0
    %v101 = vstv %s49
    %v102 = vmul.f32 %v101, %v76
    %v103 = vstv %s50
    %v104 = vmul.f32 %v103, %v84
    %v105 = vadd.f32 %v102, %v104
    %v106 = vstv %s51
    %v107 = vmul.f32 %v106, %v92
    %v108 = vadd.f32 %v105, %v107
    %v109 = vstv %s52
    %v110 = vmul.f32 %v109, %v100
    %v111 = vadd.f32 %v108, %v110
    %v112 = vstv %s57
    %v113 = vadd.f32 %v111, %v112
    %v114 = vmax.f32 %v113, 0.0
    %v115 = vstv %s53
    %v116 = vmul.f32 %v115, %v76
    %v117 = vstv %s54
    %v118 = vmul.f32 %v117, %v84
    %v119 = vadd.f32 %v116, %v118
    %v120 = vstv %s55
    %v121 = vmul.f32 %v120, %v92
    %v122 = vadd.f32 %v119, %v121
    %v123 = vstv %s56
    %v124 = vmul.f32 %v123, %v100
    %v125 = vadd.f32 %v122, %v124
    %v126 = vstv %s58
    %v127 = vadd.f32 %v125, %v126
    %v128 = vmax.f32 %v127, 0.0
    %v129 = vstv %s59
    %v130 = vmul.f32 %v129, %v114
    %v131 = vstv %s60
    %v132 = vmul.f32 %v131, %v128
    %v133 = vadd.f32 %v130, %v132
    %v134 = vstv %s63
    %v135 = vadd.f32 %v133, %v134
    %136 = vst [vmem:[#allocation7] sm:$0xff] %v135
    %v137 = vstv %s61
    %v138 = vmul.f32 %v137, %v114
    %v139 = vstv %s62
    %v140 = vmul.f32 %v139, %v128
    %v141 = vadd.f32 %v138, %v140
    %v142 = vstv %s64
    %v143 = vadd.f32 %v141, %v142
    %s144 = scalar_lea.vmem [#allocation7], %s66
    %145 = vst [vmem:[%s144] sm:$0xff] %v143
    // Predicated region
    $region18: #{tpu_custom_call.1} parent=1 // pred_check
      _
    $region19: #{tpu_custom_call.1} parent=1 // pred_check_branch
      %147 = sbr.rel (0) target = $region21
    $region20: #{tpu_custom_call.1} parent=1 // pred_region
      %s149 = ssub.s32 256, 256
      %150 = vsyncadd [#allocation4], %s149
      %s151 = sshll.u32 [#allocation7], 4
      %s152 = int_to_ptr.vmem [resolvable:$true] %s151
      %157 = dma.vmem_to_hbm [thread:$0]  %s152, 256, %s2, [#allocation4], 128, 128, 8
    $region21: #{tpu_custom_call.1} parent=1 // pred_fallthru
      _
    // Predicated region
    $region22: #{tpu_custom_call.1} parent=1 // pred_check
      _
    $region23: #{tpu_custom_call.1} parent=1 // pred_check_branch
      %159 = sbr.rel (0) target = $region25
    $region24: #{tpu_custom_call.1} parent=1 // pred_region
      %160 = dma.done [#allocation4], 256
    $region25: #{tpu_custom_call.1} parent=1 // pred_fallthru
      _
    %161 = vsyncpa [#allocation3], 1
    %162 = vsyncpa [#allocation4], 1
    %163 = vsyncpa [#allocation5], 1

</llo_original>
